<compile_context>
chip_gen: v7x
topology: tpu7x:2x2x1
jax: 0.10.0
libtpu: 0.0.40
codegen_flags: <defaults>
</compile_context>

<pallas_src>
import functools

import jax
import jax.numpy as jnp
import numpy as np
from jax.experimental import pallas as pl
from jax.experimental.pallas import tpu as pltpu


# ----------------------------------------------------------------------------
# Tiled kernel: grid over lane tiles of the flattened (N, CHW+HW) output.
# Steps [0, num_x_tiles): stats + pass-through of the matching x tile.
# Steps [num_x_tiles, end): fill the std channel with the accumulated scalar.
# ----------------------------------------------------------------------------
def _minibatch_std_tiled_kernel(x_ref, o_ref, acc_ref, *, num_x_tiles, chw, eps):
    i = pl.program_id(0)

    @pl.when(i == 0)
    def _init():
        acc_ref[...] = jnp.zeros_like(acc_ref)

    @pl.when(i < num_x_tiles)
    def _stats_and_passthrough():
        x = x_ref[...].astype(jnp.float32)                    # (N, T) f32 stats
        mu = jnp.mean(x, axis=0, keepdims=True)               # (1, T)
        d = x - mu
        var = jnp.mean(d * d, axis=0, keepdims=True)          # (1, T)
        std = jnp.sqrt(var + eps)                             # (1, T)
        acc_ref[...] += jnp.sum(std, axis=1, keepdims=True)   # (1, 1) running sum
        o_ref[...] = x_ref[...]                               # native-dtype pass-through

    @pl.when(i >= num_x_tiles)
    def _fill_std_channel():
        s = acc_ref[...] * (1.0 / chw)                        # (1, 1) f32 scalar
        o_ref[...] = jnp.broadcast_to(s, o_ref.shape).astype(o_ref.dtype)


# ----------------------------------------------------------------------------
# Grid-less fast path for tiny activations (everything resident in VMEM).
# ----------------------------------------------------------------------------
def _minibatch_std_small_kernel(x_ref, o_ref, *, chw, eps):
    x = x_ref[...].astype(jnp.float32)                        # (N, CHW)
    mu = jnp.mean(x, axis=0, keepdims=True)
    d = x - mu
    std = jnp.sqrt(jnp.mean(d * d, axis=0, keepdims=True) + eps)   # (1, CHW)
    s = jnp.mean(std, axis=1, keepdims=True)                       # (1, 1)
    n, total = o_ref.shape
    o_ref[:, :chw] = x_ref[...]                               # native-dtype pass-through
    o_ref[:, chw:] = jnp.broadcast_to(s, (n, total - chw)).astype(o_ref.dtype)


def _pick_lane_tile(hw, n, itemsize, vmem_budget=8 << 20):
    """Largest lane tile that divides hw and fits the double-buffered VMEM budget.

    Budget ≈ 2 buffers x (in tile + out tile) = 4 * N * T * itemsize bytes.
    Prefers multiples of 128 for unmasked, lane-dense vld/vst.
    """
    cap = max(1, vmem_budget // (4 * n * itemsize))
    if hw % 128 == 0:
        cap128 = max(128, (cap // 128) * 128)
        t = min(hw, cap128)
        while hw % t:
            t -= 128
        return t
    # Fallback for odd spatial sizes (masked stores; correct, just slower).
    t = min(hw, cap)
    while hw % t:
        t -= 1
    return t


def minibatch_std(x_nchw, *, eps=1e-8, mode="auto"):
    """Pallas implementation of MiniBatchStd.forward. x_nchw: (N, C, H, W)."""
    N, C, H, W = x_nchw.shape
    HW = H * W
    CHW = C * HW
    dtype = x_nchw.dtype
    itemsize = jnp.dtype(dtype).itemsize

    x_flat = x_nchw.reshape(N, CHW)          # free row-major reshape, native dtype

    cost = pl.CostEstimate(
        flops=6 * N * CHW,
        transcendentals=CHW,                 # one sqrt per spatial/channel location
        bytes_accessed=(N * CHW + N * (CHW + HW)) * itemsize,
    )

    footprint = N * (2 * CHW + HW) * itemsize
    use_small = (mode == "small") or (mode == "auto" and footprint <= (2 << 20))

    if use_small:
        out_flat = pl.pallas_call(
            functools.partial(_minibatch_std_small_kernel, chw=CHW, eps=float(eps)),
            out_shape=jax.ShapeDtypeStruct((N, CHW + HW), dtype),
            cost_estimate=cost,
        )(x_flat)
    else:
        T = _pick_lane_tile(HW, N, itemsize)
        num_x_tiles = CHW // T
        num_out_tiles = (CHW + HW) // T

        kernel = functools.partial(
            _minibatch_std_tiled_kernel,
            num_x_tiles=num_x_tiles, chw=CHW, eps=float(eps))

        out_flat = pl.pallas_call(
            kernel,
            out_shape=jax.ShapeDtypeStruct((N, CHW + HW), dtype),
            grid_spec=pltpu.PrefetchScalarGridSpec(
                num_scalar_prefetch=0,
                grid=(num_out_tiles,),
                in_specs=[pl.BlockSpec(
                    (N, T),
                    # Clamp the tail (std-channel) steps to the last valid x
                    # tile; its contents are never read there.
                    lambda i: (0, jnp.minimum(i, num_x_tiles - 1)))],
                out_specs=pl.BlockSpec((N, T), lambda i: (0, i)),
                scratch_shapes=[pltpu.VMEM((1, 1), jnp.float32)]),
            compiler_params=pltpu.CompilerParams(
                # Sequential: the std-channel steps must see the full accumulator.
                dimension_semantics=("arbitrary",)),
            cost_estimate=cost,
        )(x_flat)

    return out_flat.reshape(N, C + 1, H, W)


if __name__ == "__main__":
    key = jax.random.PRNGKey(0)
    N, C, H, W = 2, 4, 16, 16
    x = jax.random.normal(key, (N, C, H, W), jnp.float32)

    # Pure-JAX reference with identical semantics to the torch module.
    mu = jnp.mean(x, axis=0, keepdims=True)
    std_map = jnp.sqrt(jnp.mean((x - mu) ** 2, axis=0, keepdims=True) + 1e-8)
    s = jnp.mean(std_map)
    ref = jnp.concatenate([x, jnp.broadcast_to(s, (N, 1, H, W))], axis=1)

    # Exercise both the grid-less fast path (auto picks it at this size) and
    # the production tiled path.
    out_small = jax.block_until_ready(minibatch_std(x))
    out_tiled = jax.block_until_ready(minibatch_std(x, mode="tiled"))

    for out in (out_small, out_tiled):
        assert out.shape == (N, C + 1, H, W)
        np.testing.assert_allclose(np.asarray(out), np.asarray(ref),
                                   rtol=1e-6, atol=1e-6)

    print("KERNEL_OK")
</pallas_src>

<mosaic_0001>
module attributes {stable_mosaic.version = 11 : i64} {
  func.func @_minibatch_std_small_kernel(%arg0: memref<2x1024xf32, #tpu.memory_space<vmem>>, %arg1: memref<2x1280xf32, #tpu.memory_space<vmem>>) attributes {dimension_semantics = [], scalar_prefetch = 0 : i64, scratch_operands = 0 : i64, tpu.core_type = #tpu.core_type<tc>} {
    %c0 = arith.constant 0 : index
    %c0_0 = arith.constant 0 : index
    %0 = vector.load %arg0[%c0, %c0_0] : memref<2x1024xf32, #tpu.memory_space<vmem>>, vector<2x1024xf32>
    %cst = arith.constant dense<0.000000e+00> : vector<1024xf32>
    %1 = vector.multi_reduction <add>, %0, %cst [0] : vector<2x1024xf32> to vector<1024xf32>
    %2 = vector.shape_cast %1 : vector<1024xf32> to vector<1x1024xf32>
    %cst_1 = arith.constant 2.000000e+00 : f32
    %3 = vector.broadcast %cst_1 : f32 to vector<1x1024xf32>
    %4 = arith.divf %2, %3 : vector<1x1024xf32>
    %5 = vector.broadcast %4 : vector<1x1024xf32> to vector<2x1024xf32>
    %6 = arith.subf %0, %5 : vector<2x1024xf32>
    %7 = arith.mulf %6, %6 : vector<2x1024xf32>
    %cst_2 = arith.constant dense<0.000000e+00> : vector<1024xf32>
    %8 = vector.multi_reduction <add>, %7, %cst_2 [0] : vector<2x1024xf32> to vector<1024xf32>
    %9 = vector.shape_cast %8 : vector<1024xf32> to vector<1x1024xf32>
    %cst_3 = arith.constant 2.000000e+00 : f32
    %10 = vector.broadcast %cst_3 : f32 to vector<1x1024xf32>
    %11 = arith.divf %9, %10 : vector<1x1024xf32>
    %cst_4 = arith.constant 9.99999993E-9 : f32
    %12 = vector.broadcast %cst_4 : f32 to vector<1x1024xf32>
    %13 = arith.addf %11, %12 : vector<1x1024xf32>
    %14 = math.sqrt %13 : vector<1x1024xf32>
    %cst_5 = arith.constant dense<0.000000e+00> : vector<1xf32>
    %15 = vector.multi_reduction <add>, %14, %cst_5 [1] : vector<1x1024xf32> to vector<1xf32>
    %16 = vector.shape_cast %15 : vector<1xf32> to vector<1x1xf32>
    %cst_6 = arith.constant 1.024000e+03 : f32
    %17 = vector.broadcast %cst_6 : f32 to vector<1x1xf32>
    %18 = arith.divf %16, %17 : vector<1x1xf32>
    %c0_7 = arith.constant 0 : index
    %c0_8 = arith.constant 0 : index
    %19 = vector.load %arg0[%c0_7, %c0_8] : memref<2x1024xf32, #tpu.memory_space<vmem>>, vector<2x1024xf32>
    %c0_9 = arith.constant 0 : index
    %c0_10 = arith.constant 0 : index
    %20 = vector.load %arg1[%c0_9, %c0_10] : memref<2x1280xf32, #tpu.memory_space<vmem>>, vector<2x1024xf32>
    tpu.vector_store %arg1[%c0_9, %c0_10], %19 {strides = array<i32>} : memref<2x1280xf32, #tpu.memory_space<vmem>>, vector<2x1024xf32>,
    %21 = vector.shape_cast %18 : vector<1x1xf32> to vector<1x1xf32>
    %22 = vector.broadcast %21 : vector<1x1xf32> to vector<2x256xf32>
    %c0_11 = arith.constant 0 : index
    %c1024 = arith.constant 1024 : index
    %23 = vector.load %arg1[%c0_11, %c1024] : memref<2x1280xf32, #tpu.memory_space<vmem>>, vector<2x256xf32>
    tpu.vector_store %arg1[%c0_11, %c1024], %22 {strides = array<i32>} : memref<2x1280xf32, #tpu.memory_space<vmem>>, vector<2x256xf32>,
    return
  }
}

</mosaic_0001>

<llo_original>
// kernel: tpu_custom_call.1
$region0: #{tpu_custom_call.1}
  #allocation0 [shape = 'u32[]', space=smem, size = 0x4, offset = 0x4, fixed_abs, tag = 'smem constant byte address 0x4 - core index']
  #allocation1 [shape = 'u32[144,128]{1,0:T(1,128)}', space=vmem, size = 0x12000, scoped, tag = 'internal scratch']
  %s0 = inlined_call_operand.hbm [shape: f32[2,1024], index: 0, kind: input, shape index: {}]
  %s1 = inlined_call_operand.hbm [shape: f32[2,1280], index: 1, kind: output, shape index: {}]
  %s2 = sld [smem:[#allocation0]]
  $region18: #{tpu_custom_call.1} parent=0
    _
  %s4 = ssub.s32 1, %s2
  %s5 = scalar_select 0, %s4, %s2
  $region1: #{tpu_custom_call.1} parent=0
    #allocation2 [shape = 'u8[8192]{0}', space=vmem, size = 0x2000, scoped, tag = 'input window, operand 0, single buffered']
    #allocation3 [shape = 's32[1]{0}', space=sflag, size = 0x4, scoped, tag = 'scoped memory for tpu_custom_call.1']
    #allocation4 [shape = 's32[1]{0}', space=sflag, size = 0x4, scoped, tag = 'scoped memory for tpu_custom_call.1']
    #allocation5 [shape = 'u8[10240]{0}', space=vmem, size = 0x2800, scoped, tag = 'output window, operand 0, single buffered']
    %6 = vsyncpa [#allocation3], 0
    %7 = vsyncpa [#allocation4], 0
    // Predicated region
    $region2: #{tpu_custom_call.1} parent=1 // pred_check
      _
    $region3: #{tpu_custom_call.1} parent=1 // pred_check_branch
      %9 = sbr.rel (0) target = $region5
    $region4: #{tpu_custom_call.1} parent=1 // pred_region
      %s11 = ssub.s32 256, 256
      %12 = vsyncadd [#allocation3], %s11
      %s14 = sshll.u32 [#allocation2], 4
      %s15 = int_to_ptr.vmem [resolvable:$true] %s14
      %17 = dma.hbm_to_vmem [thread:$0]  %s0, 256, %s15, [#allocation3]
    $region5: #{tpu_custom_call.1} parent=1 // pred_fallthru
      _
    // Predicated region
    $region6: #{tpu_custom_call.1} parent=1 // pred_check
      _
    $region7: #{tpu_custom_call.1} parent=1 // pred_check_branch
      %19 = sbr.rel (0) target = $region9
    $region8: #{tpu_custom_call.1} parent=1 // pred_region
      %20 = dma.done [#allocation3], 256
    $region9: #{tpu_custom_call.1} parent=1 // pred_fallthru
      _
    %v21 = vld [vmem:[#allocation2] sm:$0xff]
    %v22 = vld [vmem:[#allocation2 + $0x8] sm:$0xff]
    %v25 = vcombine.high %v21, %v21
    %v27 = vunpack.c.l.s4 1983009808
    %v28 = vunpack.c.0.s8 %v27
    %v29 = vlaneseq
    %v30 = vshrl.u32 %v29, 7
    %v31 = vsub.s32 %v28, %v30
    %v32 = vrot.slane %v21, %v31
    %v34 = vunpack.c.l.s4 1983009808
    %v35 = vunpack.c.0.s8 %v34
    %v36 = vlaneseq
    %v37 = vshrl.u32 %v36, 7
    %v38 = vsub.s32 %v35, %v37
    %v39 = vrot.slane %v25, %v38
    %v40 = vcombine.high %v32, %v32
    %v41 = vcombine.high %v39, %v39
    %v42 = vcombine.high %v22, %v22
    %v44 = vunpack.c.l.s4 1983009808
    %v45 = vunpack.c.0.s8 %v44
    %v46 = vlaneseq
    %v47 = vshrl.u32 %v46, 7
    %v48 = vsub.s32 %v45, %v47
    %v49 = vrot.slane %v22, %v48
    %v51 = vunpack.c.l.s4 1983009808
    %v52 = vunpack.c.0.s8 %v51
    %v53 = vlaneseq
    %v54 = vshrl.u32 %v53, 7
    %v55 = vsub.s32 %v52, %v54
    %v56 = vrot.slane %v42, %v55
    %v57 = vcombine.high %v49, %v49
    %v58 = vcombine.high %v56, %v56
    %vm67 = vcmask 1041408
    %v68 = vsel %vm67, %v32, 0.0
    %v69 = vrot.slane %v68, 4
    %v70 = vadd.f32 %v68, %v69
    %v71 = vrot.slane %v70, 2
    %v72 = vadd.f32 %v70, %v71
    %v73 = vrot.slane %v72, 1
    %v74 = vadd.f32 %v72, %v73
    %v75 = vsel %vm67, %v40, 0.0
    %v76 = vrot.slane %v75, 4
    %v77 = vadd.f32 %v75, %v76
    %v78 = vrot.slane %v77, 2
    %v79 = vadd.f32 %v77, %v78
    %v80 = vrot.slane %v79, 1
    %v81 = vadd.f32 %v79, %v80
    %v82 = vsel %vm67, %v39, 0.0
    %v83 = vrot.slane %v82, 4
    %v84 = vadd.f32 %v82, %v83
    %v85 = vrot.slane %v84, 2
    %v86 = vadd.f32 %v84, %v85
    %v87 = vrot.slane %v86, 1
    %v88 = vadd.f32 %v86, %v87
    %v89 = vsel %vm67, %v41, 0.0
    %v90 = vrot.slane %v89, 4
    %v91 = vadd.f32 %v89, %v90
    %v92 = vrot.slane %v91, 2
    %v93 = vadd.f32 %v91, %v92
    %v94 = vrot.slane %v93, 1
    %v95 = vadd.f32 %v93, %v94
    %v96 = vsel %vm67, %v49, 0.0
    %v97 = vrot.slane %v96, 4
    %v98 = vadd.f32 %v96, %v97
    %v99 = vrot.slane %v98, 2
    %v100 = vadd.f32 %v98, %v99
    %v101 = vrot.slane %v100, 1
    %v102 = vadd.f32 %v100, %v101
    %v103 = vsel %vm67, %v57, 0.0
    %v104 = vrot.slane %v103, 4
    %v105 = vadd.f32 %v103, %v104
    %v106 = vrot.slane %v105, 2
    %v107 = vadd.f32 %v105, %v106
    %v108 = vrot.slane %v107, 1
    %v109 = vadd.f32 %v107, %v108
    %v110 = vsel %vm67, %v56, 0.0
    %v111 = vrot.slane %v110, 4
    %v112 = vadd.f32 %v110, %v111
    %v113 = vrot.slane %v112, 2
    %v114 = vadd.f32 %v112, %v113
    %v115 = vrot.slane %v114, 1
    %v116 = vadd.f32 %v114, %v115
    %v117 = vsel %vm67, %v58, 0.0
    %v118 = vrot.slane %v117, 4
    %v119 = vadd.f32 %v117, %v118
    %v120 = vrot.slane %v119, 2
    %v121 = vadd.f32 %v119, %v120
    %v122 = vrot.slane %v121, 1
    %v123 = vadd.f32 %v121, %v122
    %v124 = vrcp.pop 2.0
    %v125 = vmul.f32 %v74, %v124
    %v126 = vmul.f32 %v81, %v124
    %v127 = vmul.f32 %v88, %v124
    %v128 = vmul.f32 %v95, %v124
    %v129 = vmul.f32 %v102, %v124
    %v130 = vmul.f32 %v109, %v124
    %v131 = vmul.f32 %v116, %v124
    %v132 = vmul.f32 %v123, %v124
    %v141 = vcombine.low %v125, %v126
    %v142 = vcombine.low %v127, %v128
    %v144 = vunpack.c.l.s4 1983009808
    %v145 = vunpack.c.0.s8 %v144
    %v146 = vlaneseq
    %v147 = vshrl.u32 %v146, 7
    %v148 = vsub.s32 %v145, %v147
    %v149 = vrot.slane %v141, %v148
    %v151 = vunpack.c.l.s4 1983009808
    %v152 = vunpack.c.0.s8 %v151
    %v153 = vlaneseq
    %v154 = vshrl.u32 %v153, 7
    %v155 = vsub.s32 %v152, %v154
    %v156 = vrot.slane %v142, %v155
    %v157 = vcombine.low %v149, %v156
    %v158 = vcombine.low %v129, %v130
    %v159 = vcombine.low %v131, %v132
    %v161 = vunpack.c.l.s4 1983009808
    %v162 = vunpack.c.0.s8 %v161
    %v163 = vlaneseq
    %v164 = vshrl.u32 %v163, 7
    %v165 = vsub.s32 %v162, %v164
    %v166 = vrot.slane %v158, %v165
    %v168 = vunpack.c.l.s4 1983009808
    %v169 = vunpack.c.0.s8 %v168
    %v170 = vlaneseq
    %v171 = vshrl.u32 %v170, 7
    %v172 = vsub.s32 %v169, %v171
    %v173 = vrot.slane %v159, %v172
    %v174 = vcombine.low %v166, %v173
    %v177 = vsub.f32 %v21, %v157
    %v178 = vsub.f32 %v22, %v174
    %v179 = vmul.f32 %v177, %v177
    %v180 = vmul.f32 %v178, %v178
    %v183 = vcombine.high %v179, %v179
    %v185 = vunpack.c.l.s4 1983009808
    %v186 = vunpack.c.0.s8 %v185
    %v187 = vlaneseq
    %v188 = vshrl.u32 %v187, 7
    %v189 = vsub.s32 %v186, %v188
    %v190 = vrot.slane %v179, %v189
    %v192 = vunpack.c.l.s4 1983009808
    %v193 = vunpack.c.0.s8 %v192
    %v194 = vlaneseq
    %v195 = vshrl.u32 %v194, 7
    %v196 = vsub.s32 %v193, %v195
    %v197 = vrot.slane %v183, %v196
    %v198 = vcombine.high %v190, %v190
    %v199 = vcombine.high %v197, %v197
    %v200 = vcombine.high %v180, %v180
    %v202 = vunpack.c.l.s4 1983009808
    %v203 = vunpack.c.0.s8 %v202
    %v204 = vlaneseq
    %v205 = vshrl.u32 %v204, 7
    %v206 = vsub.s32 %v203, %v205
    %v207 = vrot.slane %v180, %v206
    %v209 = vunpack.c.l.s4 1983009808
    %v210 = vunpack.c.0.s8 %v209
    %v211 = vlaneseq
    %v212 = vshrl.u32 %v211, 7
    %v213 = vsub.s32 %v210, %v212
    %v214 = vrot.slane %v200, %v213
    %v215 = vcombine.high %v207, %v207
    %v216 = vcombine.high %v214, %v214
    %v225 = vsel %vm67, %v190, 0.0
    %v226 = vrot.slane %v225, 4
    %v227 = vadd.f32 %v225, %v226
    %v228 = vrot.slane %v227, 2
    %v229 = vadd.f32 %v227, %v228
    %v230 = vrot.slane %v229, 1
    %v231 = vadd.f32 %v229, %v230
    %v232 = vsel %vm67, %v198, 0.0
    %v233 = vrot.slane %v232, 4
    %v234 = vadd.f32 %v232, %v233
    %v235 = vrot.slane %v234, 2
    %v236 = vadd.f32 %v234, %v235
    %v237 = vrot.slane %v236, 1
    %v238 = vadd.f32 %v236, %v237
    %v239 = vsel %vm67, %v197, 0.0
    %v240 = vrot.slane %v239, 4
    %v241 = vadd.f32 %v239, %v240
    %v242 = vrot.slane %v241, 2
    %v243 = vadd.f32 %v241, %v242
    %v244 = vrot.slane %v243, 1
    %v245 = vadd.f32 %v243, %v244
    %v246 = vsel %vm67, %v199, 0.0
    %v247 = vrot.slane %v246, 4
    %v248 = vadd.f32 %v246, %v247
    %v249 = vrot.slane %v248, 2
    %v250 = vadd.f32 %v248, %v249
    %v251 = vrot.slane %v250, 1
    %v252 = vadd.f32 %v250, %v251
    %v253 = vsel %vm67, %v207, 0.0
    %v254 = vrot.slane %v253, 4
    %v255 = vadd.f32 %v253, %v254
    %v256 = vrot.slane %v255, 2
    %v257 = vadd.f32 %v255, %v256
    %v258 = vrot.slane %v257, 1
    %v259 = vadd.f32 %v257, %v258
    %v260 = vsel %vm67, %v215, 0.0
    %v261 = vrot.slane %v260, 4
    %v262 = vadd.f32 %v260, %v261
    %v263 = vrot.slane %v262, 2
    %v264 = vadd.f32 %v262, %v263
    %v265 = vrot.slane %v264, 1
    %v266 = vadd.f32 %v264, %v265
    %v267 = vsel %vm67, %v214, 0.0
    %v268 = vrot.slane %v267, 4
    %v269 = vadd.f32 %v267, %v268
    %v270 = vrot.slane %v269, 2
    %v271 = vadd.f32 %v269, %v270
    %v272 = vrot.slane %v271, 1
    %v273 = vadd.f32 %v271, %v272
    %v274 = vsel %vm67, %v216, 0.0
    %v275 = vrot.slane %v274, 4
    %v276 = vadd.f32 %v274, %v275
    %v277 = vrot.slane %v276, 2
    %v278 = vadd.f32 %v276, %v277
    %v279 = vrot.slane %v278, 1
    %v280 = vadd.f32 %v278, %v279
    %v281 = vmul.f32 %v231, %v124
    %v282 = vmul.f32 %v238, %v124
    %v283 = vmul.f32 %v245, %v124
    %v284 = vmul.f32 %v252, %v124
    %v285 = vmul.f32 %v259, %v124
    %v286 = vmul.f32 %v266, %v124
    %v287 = vmul.f32 %v273, %v124
    %v288 = vmul.f32 %v280, %v124
    %v289 = vadd.f32 %v281, 1e-08
    %v290 = vadd.f32 %v282, 1e-08
    %v291 = vadd.f32 %v283, 1e-08
    %v292 = vadd.f32 %v284, 1e-08
    %v293 = vadd.f32 %v285, 1e-08
    %v294 = vadd.f32 %v286, 1e-08
    %v295 = vadd.f32 %v287, 1e-08
    %v296 = vadd.f32 %v288, 1e-08
    %v297 = vrsqrt.pop %v289
    %v298 = vmul.f32 %v289, %v297
    %vm299 = vcmp.eq.f32.partialorder %v289, inf
    %v300 = vsel %vm299, %v289, %v298
    %vm301 = vcmp.eq.f32.partialorder %v289, 0.0
    %v302 = vand.u32 %v289, 2147483648
    %v303 = vsel %vm301, %v302, %v300
    %v304 = vrsqrt.pop %v290
    %v305 = vmul.f32 %v290, %v304
    %vm306 = vcmp.eq.f32.partialorder %v290, inf
    %v307 = vsel %vm306, %v290, %v305
    %vm308 = vcmp.eq.f32.partialorder %v290, 0.0
    %v309 = vand.u32 %v290, 2147483648
    %v310 = vsel %vm308, %v309, %v307
    %v311 = vrsqrt.pop %v291
    %v312 = vmul.f32 %v291, %v311
    %vm313 = vcmp.eq.f32.partialorder %v291, inf
    %v314 = vsel %vm313, %v291, %v312
    %vm315 = vcmp.eq.f32.partialorder %v291, 0.0
    %v316 = vand.u32 %v291, 2147483648
    %v317 = vsel %vm315, %v316, %v314
    %v318 = vrsqrt.pop %v292
    %v319 = vmul.f32 %v292, %v318
    %vm320 = vcmp.eq.f32.partialorder %v292, inf
    %v321 = vsel %vm320, %v292, %v319
    %vm322 = vcmp.eq.f32.partialorder %v292, 0.0
    %v323 = vand.u32 %v292, 2147483648
    %v324 = vsel %vm322, %v323, %v321
    %v325 = vrsqrt.pop %v293
    %v326 = vmul.f32 %v293, %v325
    %vm327 = vcmp.eq.f32.partialorder %v293, inf
    %v328 = vsel %vm327, %v293, %v326
    %vm329 = vcmp.eq.f32.partialorder %v293, 0.0
    %v330 = vand.u32 %v293, 2147483648
    %v331 = vsel %vm329, %v330, %v328
    %v332 = vrsqrt.pop %v294
    %v333 = vmul.f32 %v294, %v332
    %vm334 = vcmp.eq.f32.partialorder %v294, inf
    %v335 = vsel %vm334, %v294, %v333
    %vm336 = vcmp.eq.f32.partialorder %v294, 0.0
    %v337 = vand.u32 %v294, 2147483648
    %v338 = vsel %vm336, %v337, %v335
    %v339 = vrsqrt.pop %v295
    %v340 = vmul.f32 %v295, %v339
    %vm341 = vcmp.eq.f32.partialorder %v295, inf
    %v342 = vsel %vm341, %v295, %v340
    %vm343 = vcmp.eq.f32.partialorder %v295, 0.0
    %v344 = vand.u32 %v295, 2147483648
    %v345 = vsel %vm343, %v344, %v342
    %v346 = vrsqrt.pop %v296
    %v347 = vmul.f32 %v296, %v346
    %vm348 = vcmp.eq.f32.partialorder %v296, inf
    %v349 = vsel %vm348, %v296, %v347
    %vm350 = vcmp.eq.f32.partialorder %v296, 0.0
    %v351 = vand.u32 %v296, 2147483648
    %v352 = vsel %vm350, %v351, %v349
    %v353 = vadd.f32 %v303, %v310
    %v354 = vadd.f32 %v353, %v317
    %v355 = vadd.f32 %v354, %v324
    %v356 = vadd.f32 %v355, %v331
    %v357 = vadd.f32 %v356, %v338
    %v358 = vadd.f32 %v357, %v345
    %v359 = vadd.f32 %v358, %v352
    %360 = vadd.xlane.f32.xlu0 %v359
    %v361 = vpop.xlane.xlu0 %360
    %v362 = vrcp.pop 1024.0
    %v363 = vmul.f32 %v361, %v362
    %364 = vst [vmem:[#allocation5] sm:$0xff] %v21
    %365 = vst [vmem:[#allocation5 + $0x8] sm:$0xff] %v22
    %366 = vst [vmem:[#allocation5 + $0x10] sm:$0xf] %v363
    // Predicated region
    $region10: #{tpu_custom_call.1} parent=1 // pred_check
      _
    $region11: #{tpu_custom_call.1} parent=1 // pred_check_branch
      %368 = sbr.rel (0) target = $region13
    $region12: #{tpu_custom_call.1} parent=1 // pred_region
      %s370 = ssub.s32 320, 320
      %371 = vsyncadd [#allocation4], %s370
      %s373 = sshll.u32 [#allocation5], 4
      %s374 = int_to_ptr.vmem [resolvable:$true] %s373
      %376 = dma.vmem_to_hbm [thread:$0]  %s374, 320, %s1, [#allocation4]
    $region13: #{tpu_custom_call.1} parent=1 // pred_fallthru
      _
    // Predicated region
    $region14: #{tpu_custom_call.1} parent=1 // pred_check
      _
    $region15: #{tpu_custom_call.1} parent=1 // pred_check_branch
      %378 = sbr.rel (0) target = $region17
    $region16: #{tpu_custom_call.1} parent=1 // pred_region
      %379 = dma.done [#allocation4], 320
    $region17: #{tpu_custom_call.1} parent=1 // pred_fallthru
      _
    %380 = vsyncpa [#allocation3], 1
    %381 = vsyncpa [#allocation4], 1

</llo_original>
